<compile_context>
chip_gen: v7x
topology: tpu7x:2x2x1
jax: 0.10.0
libtpu: 0.0.40
codegen_flags: <defaults>
</compile_context>

<pallas_src>
import math
from functools import partial

import jax
import jax.numpy as jnp
from jax.experimental import pallas as pl
from jax.experimental.pallas import tpu as pltpu


_VMEM_LIMIT_BYTES = 64 * 1024 * 1024   # explicit scoped-VMEM budget (fits v5e/v6e/v7x)


# ----------------------------------------------------------------------------
# In-kernel helpers (all f32 elementwise math; portable to v5e's f32-only VPU)
# ----------------------------------------------------------------------------
def _erf(x):
    # Abramowitz & Stegun 7.1.26, |err| < 1.5e-7 in exact arithmetic.
    # TODO(synk): Mosaic has no guaranteed native lax.erf lowering; the divide uses
    #             the approx EUP reciprocal per the perf review (inference-only).
    a1, a2, a3, a4, a5 = 0.254829592, -0.284496736, 1.421413741, -1.453152027, 1.061405429
    p = 0.3275911
    sgn = jnp.where(x >= 0.0, 1.0, -1.0)
    ax = jnp.abs(x)
    t = pl.reciprocal(1.0 + p * ax, approx=True)
    poly = ((((a5 * t + a4) * t + a3) * t + a2) * t + a1) * t
    return sgn * (1.0 - poly * jnp.exp(-ax * ax))


def _gelu_exact(x):
    # PyTorch F.gelu (default, erf-based): 0.5 * x * (1 + erf(x / sqrt(2)))
    return 0.5 * x * (1.0 + _erf(x * (1.0 / math.sqrt(2.0))))


def _layer_norm(x, g, b, eps):
    # x: (N, D) f32, g/b: (1, D) f32
    mu = jnp.mean(x, axis=-1, keepdims=True)
    var = jnp.mean((x - mu) ** 2, axis=-1, keepdims=True)
    return (x - mu) * jax.lax.rsqrt(var + eps) * g + b


# ----------------------------------------------------------------------------
# Pass 1 kernel: shared K/V projections (grid over batch, computed once)
#   self-attn KV = norm_c(content) @ Wkv, cross-attn KV = memory @ Wkv,
#   stored head-split as (2H, seq, hd) bf16 so the main kernel never relayouts
#   the (large) K/V activations.
# ----------------------------------------------------------------------------
def _kv_project_kernel(content_ref, memory_ref, nc_g_ref, nc_b_ref,
                       sa_wkv_ref, sa_bkv_ref, ca_wkv_ref, ca_bkv_ref,
                       kvs_out_ref, kvm_out_ref, *, nhead, eps):
    D = content_ref.shape[-1]
    hd = D // nhead
    n2h = 2 * nhead

    def split_2h(x):   # (N, 2D) -> (2H, N, hd): lane slices stacked on a head axis
        parts = [x[:, i * hd:(i + 1) * hd][None] for i in range(n2h)]
        return parts[0] if n2h == 1 else jnp.concatenate(parts, axis=0)

    # self-attention K/V: projection of norm_c(content) -- single (T,D)@(D,2D) matmul
    cn = _layer_norm(content_ref[...].astype(jnp.float32),
                     nc_g_ref[...], nc_b_ref[...], eps)
    kvs = jnp.dot(cn.astype(jnp.bfloat16), sa_wkv_ref[...],
                  preferred_element_type=jnp.float32) + sa_bkv_ref[...]
    kvs_out_ref[...] = split_2h(kvs).astype(kvs_out_ref.dtype)

    # cross-attention K/V: projection of memory (already LayerNorm'd by the ViT)
    kvm = jnp.dot(memory_ref[...].astype(jnp.bfloat16), ca_wkv_ref[...],
                  preferred_element_type=jnp.float32) + ca_bkv_ref[...]
    kvm_out_ref[...] = split_2h(kvm).astype(kvm_out_ref.dtype)


# ----------------------------------------------------------------------------
# Pass 2 kernel: fused decoder layer for one (stream, batch) grid point.
# ----------------------------------------------------------------------------
def _decoder_stream_kernel(*refs, nhead, eps, has_mask):
    it = iter(refs)
    tgt_ref = next(it)                        # (Tp, D)        this stream/batch target
    kvs_ref = next(it)                        # (2H, Tp, hd)   bf16, shared self-attn K|V
    kvm_ref = next(it)                        # (2H, M,  hd)   bf16, shared cross-attn K|V
    mask_ref = next(it) if has_mask else None  # (Tp, Tp)      additive
    lnS_g_ref, lnS_b_ref = next(it), next(it)  # (1, D)        per-stream pre-LN (norm_q/norm_c)
    n1_g_ref, n1_b_ref = next(it), next(it)
    n2_g_ref, n2_b_ref = next(it), next(it)
    sa_wq_ref, sa_bq_ref, sa_wo_ref, sa_bo_ref = next(it), next(it), next(it), next(it)
    ca_wq_ref, ca_bq_ref, ca_wo_ref, ca_bo_ref = next(it), next(it), next(it), next(it)
    w1_ref, b1_ref, w2_ref, b2_ref = next(it), next(it), next(it), next(it)
    out_ref = next(it)

    H = nhead
    tgt = tgt_ref[...].astype(jnp.float32)     # (Tp, D)
    D = tgt.shape[-1]
    hd = D // H
    scale = 1.0 / math.sqrt(hd)

    def split_heads(x):
        # (N, D) -> (H, N, hd): lane slices stacked on a new leading (head) axis.
        parts = [x[:, h * hd:(h + 1) * hd][None] for h in range(H)]
        return parts[0] if H == 1 else jnp.concatenate(parts, axis=0)

    def attend(x_norm, kv_h, wq_ref, bq_ref, wo_ref, bo_ref, mask):
        # Lane-dense Q projection: one (N, D) @ (D, D) matmul (full-K MXU issue).
        q = jnp.dot(x_norm.astype(jnp.bfloat16), wq_ref[...],
                    preferred_element_type=jnp.float32) + bq_ref[...]
        q_h = split_heads(q.astype(jnp.bfloat16))                      # (H, N, hd)
        k_h = kv_h[:H]                                                 # (H, S, hd)
        v_h = kv_h[H:]                                                 # (H, S, hd)
        s = jnp.einsum('hqd,hkd->hqk', q_h, k_h,
                       preferred_element_type=jnp.float32) * scale
        if mask is not None:
            s = s + mask[None]
        s = s - jnp.max(s, axis=-1, keepdims=True)
        p = jnp.exp(s)
        p = p * pl.reciprocal(jnp.sum(p, axis=-1, keepdims=True), approx=True)
        o = jnp.einsum('hqk,hkd->hqd', p.astype(jnp.bfloat16), v_h,
                       preferred_element_type=jnp.float32)             # (H, N, hd)
        # Concat heads along lanes -> single fused output projection with K = H*hd = D.
        o2 = o[0] if H == 1 else jnp.concatenate([o[h] for h in range(H)], axis=-1)
        return jnp.dot(o2.astype(jnp.bfloat16), wo_ref[...],
                       preferred_element_type=jnp.float32) + bo_ref[...]

    mask = mask_ref[...].astype(jnp.float32) if has_mask else None

    # self-attention: pre-LN with this stream's norm (norm_q / norm_c); KV = norm_c(content)
    tgt_norm = _layer_norm(tgt, lnS_g_ref[...], lnS_b_ref[...], eps)
    tgt = tgt + attend(tgt_norm, kvs_ref[...],
                       sa_wq_ref, sa_bq_ref, sa_wo_ref, sa_bo_ref, mask)

    # cross-attention over memory (no mask); pre-LN with norm1 (+ residual)
    tgt = tgt + attend(_layer_norm(tgt, n1_g_ref[...], n1_b_ref[...], eps), kvm_ref[...],
                       ca_wq_ref, ca_bq_ref, ca_wo_ref, ca_bo_ref, None)

    # MLP: linear2(gelu(linear1(norm2(tgt)))) + residual (dropouts = identity in eval)
    x = _layer_norm(tgt, n2_g_ref[...], n2_b_ref[...], eps)
    h1 = jnp.dot(x.astype(jnp.bfloat16), w1_ref[...],
                 preferred_element_type=jnp.float32) + b1_ref[...]
    h1 = _gelu_exact(h1)
    tgt = tgt + jnp.dot(h1.astype(jnp.bfloat16), w2_ref[...],
                        preferred_element_type=jnp.float32) + b2_ref[...]

    out_ref[...] = tgt.astype(out_ref.dtype)


# ----------------------------------------------------------------------------
# One-time host-side parameter preparation (hoisted out of the forward path)
# ----------------------------------------------------------------------------
def prepare_params(p):
    """Transpose packed PyTorch weights to (in, out) layout, fuse K/V, cast to bf16."""
    D = p["nq_g"].shape[-1]

    def mha_prep(w, b, wo, bo, tag):
        b = b.reshape(-1).astype(jnp.float32)
        return {
            f"{tag}_wq":  jnp.transpose(w[0:D]).astype(jnp.bfloat16),       # (D, D)
            f"{tag}_bq":  b[0:D].reshape(1, D),
            f"{tag}_wkv": jnp.transpose(w[D:3 * D]).astype(jnp.bfloat16),   # (D, 2D) [K | V]
            f"{tag}_bkv": b[D:3 * D].reshape(1, 2 * D),
            f"{tag}_wo":  jnp.transpose(wo).astype(jnp.bfloat16),           # (D, D)
            f"{tag}_bo":  bo.reshape(1, D).astype(jnp.float32),
        }

    pp = {k: p[k].astype(jnp.float32) for k in
          ("nq_g", "nq_b", "nc_g", "nc_b", "n1_g", "n1_b", "n2_g", "n2_b")}
    pp.update(mha_prep(p["sa_w"], p["sa_b"], p["sa_wo"], p["sa_bo"], "sa"))
    pp.update(mha_prep(p["ca_w"], p["ca_b"], p["ca_wo"], p["ca_bo"], "ca"))
    pp["w1"] = jnp.transpose(p["w1"]).astype(jnp.bfloat16)   # (D, F)
    pp["b1"] = p["b1"].reshape(1, -1).astype(jnp.float32)
    pp["w2"] = jnp.transpose(p["w2"]).astype(jnp.bfloat16)   # (F, D)
    pp["b2"] = p["b2"].reshape(1, -1).astype(jnp.float32)
    return pp


# ----------------------------------------------------------------------------
# Wrapper: KV-precompute pallas_call + fused per-(stream, batch) pallas_call
# ----------------------------------------------------------------------------
def decoder_layer_forward(pp, query, content, memory, *, nhead,
                          tgt_query_mask=None, content_mask=None,
                          content_key_padding_mask=None,
                          update_content=True, eps=1e-5):
    # TODO(synk): content_key_padding_mask (per-batch key padding) is not supported;
    #             it would need a per-(stream, batch) additive key bias operand.
    del content_key_padding_mask

    B, T, D = query.shape
    M = memory.shape[1]
    assert D % nhead == 0, "d_model must be divisible by nhead"
    hd = D // nhead
    H2 = 2 * nhead

    # Pad target length to a sublane multiple so per-batch blocks are tile-aligned.
    Tp = ((T + 7) // 8) * 8
    pad_t = Tp - T

    def pad_rows(x):
        return x if pad_t == 0 else jnp.pad(x, ((0, 0), (0, pad_t), (0, 0)))

    query_p = pad_rows(query.astype(jnp.float32))
    content_p = pad_rows(content.astype(jnp.float32))
    memory_f = memory.astype(jnp.float32)

    stream_masks = [tgt_query_mask] + ([content_mask] if update_content else [])
    has_mask = pad_t > 0 or any(m is not None for m in stream_masks)
    if has_mask:
        key_bias = jnp.where(jnp.arange(Tp) < T, 0.0, -1e9).astype(jnp.float32)[None, :]

        def prep_mask(m):
            base = (jnp.zeros((Tp, Tp), jnp.float32) if m is None
                    else jnp.pad(m.astype(jnp.float32), ((0, pad_t), (0, pad_t))))
            return base + key_bias if pad_t > 0 else base

        stream_masks = [prep_mask(m) for m in stream_masks]

    # ---------------- Pass 1: shared K/V projections (once, grid over batch) --------
    def _c1(arr):
        nd = arr.ndim
        return pl.BlockSpec(arr.shape, lambda b, _n=nd: (0,) * _n)

    kv_consts = [pp["nc_g"], pp["nc_b"], pp["sa_wkv"], pp["sa_bkv"],
                 pp["ca_wkv"], pp["ca_bkv"]]
    kv_self, kv_mem = pl.pallas_call(
        partial(_kv_project_kernel, nhead=nhead, eps=eps),
        grid=(B,),
        in_specs=[pl.BlockSpec((None, Tp, D), lambda b: (b, 0, 0)),
                  pl.BlockSpec((None, M, D), lambda b: (b, 0, 0))]
                 + [_c1(a) for a in kv_consts],
        out_specs=[pl.BlockSpec((None, H2, Tp, hd), lambda b: (b, 0, 0, 0)),
                   pl.BlockSpec((None, H2, M, hd), lambda b: (b, 0, 0, 0))],
        out_shape=[jax.ShapeDtypeStruct((B, H2, Tp, hd), jnp.bfloat16),
                   jax.ShapeDtypeStruct((B, H2, M, hd), jnp.bfloat16)],
        compiler_params=pltpu.CompilerParams(
            dimension_semantics=("parallel",),
            vmem_limit_bytes=_VMEM_LIMIT_BYTES),
    )(content_p, memory_f, *kv_consts)

    # ---------------- Pass 2: fused decoder layer, grid=(streams, batch) ------------
    streams = [query_p] + ([content_p] if update_content else [])
    S = len(streams)
    tgt_stacked = jnp.stack(streams, axis=0)                           # (S, B, Tp, D)
    lnS_g = jnp.stack([pp["nq_g"]] + ([pp["nc_g"]] if update_content else []), axis=0)
    lnS_b = jnp.stack([pp["nq_b"]] + ([pp["nc_b"]] if update_content else []), axis=0)

    operands = [tgt_stacked, kv_self, kv_mem]
    in_specs = [pl.BlockSpec((None, None, Tp, D), lambda s, b: (s, b, 0, 0)),
                pl.BlockSpec((None, H2, Tp, hd), lambda s, b: (b, 0, 0, 0)),
                pl.BlockSpec((None, H2, M, hd), lambda s, b: (b, 0, 0, 0))]
    if has_mask:
        operands.append(jnp.stack(stream_masks, axis=0))               # (S, Tp, Tp)
        in_specs.append(pl.BlockSpec((None, Tp, Tp), lambda s, b: (s, 0, 0)))
    operands += [lnS_g, lnS_b]
    in_specs += [pl.BlockSpec((None, 1, D), lambda s, b: (s, 0, 0))] * 2

    consts = [pp["n1_g"], pp["n1_b"], pp["n2_g"], pp["n2_b"],
              pp["sa_wq"], pp["sa_bq"], pp["sa_wo"], pp["sa_bo"],
              pp["ca_wq"], pp["ca_bq"], pp["ca_wo"], pp["ca_bo"],
              pp["w1"], pp["b1"], pp["w2"], pp["b2"]]

    # TODO(synk): mark these constant-weight blocks pipeline_mode=pl.Buffered(1)
    #             (their index never changes) once verified on this jax build.
    def _c2(arr):
        nd = arr.ndim
        return pl.BlockSpec(arr.shape, lambda s, b, _n=nd: (0,) * _n)

    operands += consts
    in_specs += [_c2(a) for a in consts]

    out = pl.pallas_call(
        partial(_decoder_stream_kernel, nhead=nhead, eps=eps, has_mask=has_mask),
        grid=(S, B),
        in_specs=in_specs,
        out_specs=pl.BlockSpec((None, None, Tp, D), lambda s, b: (s, b, 0, 0)),
        out_shape=jax.ShapeDtypeStruct((S, B, Tp, D), jnp.float32),
        compiler_params=pltpu.CompilerParams(
            dimension_semantics=("parallel", "parallel"),
            vmem_limit_bytes=_VMEM_LIMIT_BYTES),
    )(*operands)

    query_out = out[0, :, :T, :].astype(query.dtype)
    content_out = out[1, :, :T, :].astype(content.dtype) if update_content else content
    return query_out, content_out


# ----------------------------------------------------------------------------
# Pure-JAX reference (PyTorch semantics) for a tolerance check
# ----------------------------------------------------------------------------
def _reference_forward(p, query, content, memory, *, nhead,
                       tgt_query_mask=None, content_mask=None,
                       update_content=True, eps=1e-5):
    def ln(x, g, b):
        mu = jnp.mean(x, axis=-1, keepdims=True)
        var = jnp.mean((x - mu) ** 2, axis=-1, keepdims=True)
        return (x - mu) / jnp.sqrt(var + eps) * g + b

    def mha(xq, xkv, w, b, wo, bo, mask):
        B, T, D = xq.shape
        S = xkv.shape[1]
        H = nhead
        hd = D // H
        b = b.reshape(-1)
        q = xq @ w[0:D].T + b[0:D]
        k = xkv @ w[D:2 * D].T + b[D:2 * D]
        v = xkv @ w[2 * D:3 * D].T + b[2 * D:3 * D]
        q = q.reshape(B, T, H, hd).transpose(0, 2, 1, 3)
        k = k.reshape(B, S, H, hd).transpose(0, 2, 1, 3)
        v = v.reshape(B, S, H, hd).transpose(0, 2, 1, 3)
        s = jnp.einsum('bhqd,bhkd->bhqk', q, k) / math.sqrt(hd)
        if mask is not None:
            s = s + mask
        a = jax.nn.softmax(s, axis=-1)
        o = jnp.einsum('bhqk,bhkd->bhqd', a, v).transpose(0, 2, 1, 3).reshape(B, T, D)
        return o @ wo.T + bo.reshape(-1)

    def gelu(x):
        return 0.5 * x * (1.0 + jax.scipy.special.erf(x / math.sqrt(2.0)))

    def stream(tgt, tgt_norm, kv, mask):
        tgt = tgt + mha(tgt_norm, kv, p["sa_w"], p["sa_b"], p["sa_wo"], p["sa_bo"], mask)
        tgt = tgt + mha(ln(tgt, p["n1_g"], p["n1_b"]), memory,
                        p["ca_w"], p["ca_b"], p["ca_wo"], p["ca_bo"], None)
        x = ln(tgt, p["n2_g"], p["n2_b"])
        h = gelu(x @ p["w1"].T + p["b1"].reshape(-1))
        return tgt + h @ p["w2"].T + p["b2"].reshape(-1)

    qn = ln(query, p["nq_g"], p["nq_b"])
    cn = ln(content, p["nc_g"], p["nc_b"])
    q_out = stream(query, qn, cn, tgt_query_mask)
    c_out = stream(content, cn, cn, content_mask) if update_content else content
    return q_out, c_out


# ----------------------------------------------------------------------------
# Deterministic parameter init (synthetic weights; PyTorch Linear convention)
# ----------------------------------------------------------------------------
def init_params(key, d_model, dim_feedforward):
    ks = jax.random.split(key, 12)
    w = lambda k, shape, s=0.05: (jax.random.normal(k, shape, jnp.float32) * s)
    ones = lambda n: jnp.ones((1, n), jnp.float32)
    zeros = lambda n: jnp.zeros((1, n), jnp.float32)
    return {
        # top-level LayerNorms
        "nq_g": ones(d_model), "nq_b": zeros(d_model),
        "nc_g": ones(d_model), "nc_b": zeros(d_model),
        "n1_g": ones(d_model), "n1_b": zeros(d_model),
        "n2_g": ones(d_model), "n2_b": zeros(d_model),
        # self-attn: packed in_proj (3D, D) + bias, out_proj (D, D) + bias
        "sa_w": w(ks[0], (3 * d_model, d_model)), "sa_b": w(ks[1], (1, 3 * d_model)),
        "sa_wo": w(ks[2], (d_model, d_model)), "sa_bo": w(ks[3], (1, d_model)),
        # cross-attn
        "ca_w": w(ks[4], (3 * d_model, d_model)), "ca_b": w(ks[5], (1, 3 * d_model)),
        "ca_wo": w(ks[6], (d_model, d_model)), "ca_bo": w(ks[7], (1, d_model)),
        # MLP
        "w1": w(ks[8], (dim_feedforward, d_model)), "b1": w(ks[9], (1, dim_feedforward)),
        "w2": w(ks[10], (d_model, dim_feedforward)), "b2": w(ks[11], (1, d_model)),
    }


if __name__ == "__main__":
    B, T, M = 2, 8, 16          # batch, target (query/content) len, memory len
    D, H, FF = 32, 4, 64        # d_model, nhead, dim_feedforward

    key = jax.random.PRNGKey(0)
    kq, kc, km, kp = jax.random.split(key, 4)
    query = jax.random.normal(kq, (B, T, D), jnp.float32)
    content = jax.random.normal(kc, (B, T, D), jnp.float32)
    memory = jax.random.normal(km, (B, M, D), jnp.float32)
    params = init_params(kp, D, FF)
    prepped = prepare_params(params)   # one-time weight prep, hoisted out of forward

    # causal-style additive float masks (0 allowed / -1e9 disallowed)
    neg = jnp.float32(-1e9)
    causal = jnp.where(jnp.tril(jnp.ones((T, T), bool)), 0.0, neg).astype(jnp.float32)

    q_out, c_out = decoder_layer_forward(
        prepped, query, content, memory,
        nhead=H,
        tgt_query_mask=causal,
        content_mask=causal,
        update_content=True,
    )
    jax.block_until_ready((q_out, c_out))

    # correctness vs. pure-JAX (torch-semantics) reference
    q_ref, c_ref = _reference_forward(params, query, content, memory, nhead=H,
                                      tgt_query_mask=causal, content_mask=causal,
                                      update_content=True)
    err = max(float(jnp.max(jnp.abs(q_out - q_ref))),
              float(jnp.max(jnp.abs(c_out - c_ref))))

    assert q_out.shape == (B, T, D) and c_out.shape == (B, T, D)
    assert bool(jnp.all(jnp.isfinite(q_out))) and bool(jnp.all(jnp.isfinite(c_out)))
    assert err < 5e-2, f"kernel deviates from reference: max abs err {err}"
    print("KERNEL_OK")
</pallas_src>

<mosaic_0001>
module attributes {stable_mosaic.version = 11 : i64} {
  func.func @_kv_project_kernel(%arg0: i32, %arg1: memref<1x8x32xf32, #tpu.memory_space<vmem>>, %arg2: memref<1x16x32xf32, #tpu.memory_space<vmem>>, %arg3: memref<1x32xf32, #tpu.memory_space<vmem>>, %arg4: memref<1x32xf32, #tpu.memory_space<vmem>>, %arg5: memref<32x64xbf16, #tpu.memory_space<vmem>>, %arg6: memref<1x64xf32, #tpu.memory_space<vmem>>, %arg7: memref<32x64xbf16, #tpu.memory_space<vmem>>, %arg8: memref<1x64xf32, #tpu.memory_space<vmem>>, %arg9: memref<1x8x8x8xbf16, #tpu.memory_space<vmem>>, %arg10: memref<1x8x16x8xbf16, #tpu.memory_space<vmem>>) attributes {dimension_semantics = [#tpu.dimension_semantics<parallel>], iteration_bounds = array<i64: 2>, scalar_prefetch = 0 : i64, scratch_operands = 0 : i64, tpu.core_type = #tpu.core_type<tc>, window_params = [{transform_indices = @transform_0, window_bounds = array<i64: 1, 8, 32>}, {transform_indices = @transform_1, window_bounds = array<i64: 1, 16, 32>}, {pipeline_mode = #tpu.pipeline_mode<synchronous>, transform_indices = @transform_2, window_bounds = array<i64: 1, 32>}, {pipeline_mode = #tpu.pipeline_mode<synchronous>, transform_indices = @transform_3, window_bounds = array<i64: 1, 32>}, {pipeline_mode = #tpu.pipeline_mode<synchronous>, transform_indices = @transform_4, window_bounds = array<i64: 32, 64>}, {pipeline_mode = #tpu.pipeline_mode<synchronous>, transform_indices = @transform_5, window_bounds = array<i64: 1, 64>}, {pipeline_mode = #tpu.pipeline_mode<synchronous>, transform_indices = @transform_6, window_bounds = array<i64: 32, 64>}, {pipeline_mode = #tpu.pipeline_mode<synchronous>, transform_indices = @transform_7, window_bounds = array<i64: 1, 64>}, {transform_indices = @transform_8, window_bounds = array<i64: 1, 8, 8, 8>}, {transform_indices = @transform_9, window_bounds = array<i64: 1, 8, 16, 8>}]} {
    %c0 = arith.constant 0 : index
    %c0_0 = arith.constant 0 : index
    %c0_1 = arith.constant 0 : index
    %0 = vector.load %arg1[%c0, %c0_0, %c0_1] : memref<1x8x32xf32, #tpu.memory_space<vmem>>, vector<1x8x32xf32>
    %1 = vector.shape_cast %0 : vector<1x8x32xf32> to vector<8x32xf32>
    %c0_2 = arith.constant 0 : index
    %c0_3 = arith.constant 0 : index
    %2 = vector.load %arg3[%c0_2, %c0_3] : memref<1x32xf32, #tpu.memory_space<vmem>>, vector<1x32xf32>
    %c0_4 = arith.constant 0 : index
    %c0_5 = arith.constant 0 : index
    %3 = vector.load %arg4[%c0_4, %c0_5] : memref<1x32xf32, #tpu.memory_space<vmem>>, vector<1x32xf32>
    %cst = arith.constant dense<0.000000e+00> : vector<8xf32>
    %4 = vector.multi_reduction <add>, %1, %cst [1] : vector<8x32xf32> to vector<8xf32>
    %5 = vector.shape_cast %4 : vector<8xf32> to vector<8x1xf32>
    %cst_6 = arith.constant 3.200000e+01 : f32
    %6 = vector.broadcast %cst_6 : f32 to vector<8x1xf32>
    %7 = arith.divf %5, %6 : vector<8x1xf32>
    %8 = vector.broadcast %7 : vector<8x1xf32> to vector<8x32xf32>
    %9 = arith.subf %1, %8 : vector<8x32xf32>
    %10 = arith.mulf %9, %9 : vector<8x32xf32>
    %cst_7 = arith.constant dense<0.000000e+00> : vector<8xf32>
    %11 = vector.multi_reduction <add>, %10, %cst_7 [1] : vector<8x32xf32> to vector<8xf32>
    %12 = vector.shape_cast %11 : vector<8xf32> to vector<8x1xf32>
    %cst_8 = arith.constant 3.200000e+01 : f32
    %13 = vector.broadcast %cst_8 : f32 to vector<8x1xf32>
    %14 = arith.divf %12, %13 : vector<8x1xf32>
    %15 = vector.broadcast %7 : vector<8x1xf32> to vector<8x32xf32>
    %16 = arith.subf %1, %15 : vector<8x32xf32>
    %cst_9 = arith.constant 9.99999974E-6 : f32
    %17 = vector.broadcast %cst_9 : f32 to vector<8x1xf32>
    %18 = arith.addf %14, %17 : vector<8x1xf32>
    %19 = math.rsqrt %18 : vector<8x1xf32>
    %20 = vector.broadcast %19 : vector<8x1xf32> to vector<8x32xf32>
    %21 = arith.mulf %16, %20 : vector<8x32xf32>
    %22 = vector.broadcast %2 : vector<1x32xf32> to vector<8x32xf32>
    %23 = arith.mulf %21, %22 : vector<8x32xf32>
    %24 = vector.broadcast %3 : vector<1x32xf32> to vector<8x32xf32>
    %25 = arith.addf %23, %24 : vector<8x32xf32>
    %26 = arith.truncf %25 : vector<8x32xf32> to vector<8x32xbf16>
    %c0_10 = arith.constant 0 : index
    %c0_11 = arith.constant 0 : index
    %27 = vector.load %arg5[%c0_10, %c0_11] : memref<32x64xbf16, #tpu.memory_space<vmem>>, vector<32x64xbf16>
    %cst_12 = arith.constant dense<0.000000e+00> : vector<8x64xf32>
    %28 = tpu.matmul %26, %27, %cst_12 {dimension_numbers = #tpu.dot_dimension_numbers<[1], [0], [0], [1], [0, 0, 1, 1], [], []>} : vector<8x32xbf16>, vector<32x64xbf16>, vector<8x64xf32> -> vector<8x64xf32>
    %c0_13 = arith.constant 0 : index
    %c0_14 = arith.constant 0 : index
    %29 = vector.load %arg6[%c0_13, %c0_14] : memref<1x64xf32, #tpu.memory_space<vmem>>, vector<1x64xf32>
    %30 = vector.broadcast %29 : vector<1x64xf32> to vector<8x64xf32>
    %31 = arith.addf %28, %30 : vector<8x64xf32>
    %32 = vector.extract_strided_slice %31 {offsets = [0, 0], sizes = [8, 8], strides = [1, 1]} : vector<8x64xf32> to vector<8x8xf32>
    %33 = vector.shape_cast %32 : vector<8x8xf32> to vector<1x8x8xf32>
    %34 = vector.extract_strided_slice %31 {offsets = [0, 8], sizes = [8, 8], strides = [1, 1]} : vector<8x64xf32> to vector<8x8xf32>
    %35 = vector.shape_cast %34 : vector<8x8xf32> to vector<1x8x8xf32>
    %36 = vector.extract_strided_slice %31 {offsets = [0, 16], sizes = [8, 8], strides = [1, 1]} : vector<8x64xf32> to vector<8x8xf32>
    %37 = vector.shape_cast %36 : vector<8x8xf32> to vector<1x8x8xf32>
    %38 = vector.extract_strided_slice %31 {offsets = [0, 24], sizes = [8, 8], strides = [1, 1]} : vector<8x64xf32> to vector<8x8xf32>
    %39 = vector.shape_cast %38 : vector<8x8xf32> to vector<1x8x8xf32>
    %40 = vector.extract_strided_slice %31 {offsets = [0, 32], sizes = [8, 8], strides = [1, 1]} : vector<8x64xf32> to vector<8x8xf32>
    %41 = vector.shape_cast %40 : vector<8x8xf32> to vector<1x8x8xf32>
    %42 = vector.extract_strided_slice %31 {offsets = [0, 40], sizes = [8, 8], strides = [1, 1]} : vector<8x64xf32> to vector<8x8xf32>
    %43 = vector.shape_cast %42 : vector<8x8xf32> to vector<1x8x8xf32>
    %44 = vector.extract_strided_slice %31 {offsets = [0, 48], sizes = [8, 8], strides = [1, 1]} : vector<8x64xf32> to vector<8x8xf32>
    %45 = vector.shape_cast %44 : vector<8x8xf32> to vector<1x8x8xf32>
    %46 = vector.extract_strided_slice %31 {offsets = [0, 56], sizes = [8, 8], strides = [1, 1]} : vector<8x64xf32> to vector<8x8xf32>
    %47 = vector.shape_cast %46 : vector<8x8xf32> to vector<1x8x8xf32>
    %48 = tpu.concatenate %33, %35, %37, %39, %41, %43, %45, %47 in 0 : vector<1x8x8xf32>, vector<1x8x8xf32>, vector<1x8x8xf32>, vector<1x8x8xf32>, vector<1x8x8xf32>, vector<1x8x8xf32>, vector<1x8x8xf32>, vector<1x8x8xf32> -> vector<8x8x8xf32>
    %49 = arith.truncf %48 : vector<8x8x8xf32> to vector<8x8x8xbf16>
    %c0_15 = arith.constant 0 : index
    %c0_16 = arith.constant 0 : index
    %c0_17 = arith.constant 0 : index
    %c0_18 = arith.constant 0 : index
    %50 = vector.load %arg9[%c0_15, %c0_16, %c0_17, %c0_18] : memref<1x8x8x8xbf16, #tpu.memory_space<vmem>>, vector<1x8x8x8xbf16>
    %51 = vector.shape_cast %50 : vector<1x8x8x8xbf16> to vector<8x8x8xbf16>
    %52 = vector.shape_cast %49 : vector<8x8x8xbf16> to vector<1x8x8x8xbf16>
    tpu.vector_store %arg9[%c0_15, %c0_16, %c0_17, %c0_18], %52 {strides = array<i32>} : memref<1x8x8x8xbf16, #tpu.memory_space<vmem>>, vector<1x8x8x8xbf16>,
    %c0_19 = arith.constant 0 : index
    %c0_20 = arith.constant 0 : index
    %c0_21 = arith.constant 0 : index
    %53 = vector.load %arg2[%c0_19, %c0_20, %c0_21] : memref<1x16x32xf32, #tpu.memory_space<vmem>>, vector<1x16x32xf32>
    %54 = vector.shape_cast %53 : vector<1x16x32xf32> to vector<16x32xf32>
    %55 = arith.truncf %54 : vector<16x32xf32> to vector<16x32xbf16>
    %c0_22 = arith.constant 0 : index
    %c0_23 = arith.constant 0 : index
    %56 = vector.load %arg7[%c0_22, %c0_23] : memref<32x64xbf16, #tpu.memory_space<vmem>>, vector<32x64xbf16>
    %cst_24 = arith.constant dense<0.000000e+00> : vector<16x64xf32>
    %57 = tpu.matmul %55, %56, %cst_24 {dimension_numbers = #tpu.dot_dimension_numbers<[1], [0], [0], [1], [0, 0, 1, 1], [], []>} : vector<16x32xbf16>, vector<32x64xbf16>, vector<16x64xf32> -> vector<16x64xf32>
    %c0_25 = arith.constant 0 : index
    %c0_26 = arith.constant 0 : index
    %58 = vector.load %arg8[%c0_25, %c0_26] : memref<1x64xf32, #tpu.memory_space<vmem>>, vector<1x64xf32>
    %59 = vector.broadcast %58 : vector<1x64xf32> to vector<16x64xf32>
    %60 = arith.addf %57, %59 : vector<16x64xf32>
    %61 = vector.extract_strided_slice %60 {offsets = [0, 0], sizes = [16, 8], strides = [1, 1]} : vector<16x64xf32> to vector<16x8xf32>
    %62 = vector.shape_cast %61 : vector<16x8xf32> to vector<1x16x8xf32>
    %63 = vector.extract_strided_slice %60 {offsets = [0, 8], sizes = [16, 8], strides = [1, 1]} : vector<16x64xf32> to vector<16x8xf32>
    %64 = vector.shape_cast %63 : vector<16x8xf32> to vector<1x16x8xf32>
    %65 = vector.extract_strided_slice %60 {offsets = [0, 16], sizes = [16, 8], strides = [1, 1]} : vector<16x64xf32> to vector<16x8xf32>
    %66 = vector.shape_cast %65 : vector<16x8xf32> to vector<1x16x8xf32>
    %67 = vector.extract_strided_slice %60 {offsets = [0, 24], sizes = [16, 8], strides = [1, 1]} : vector<16x64xf32> to vector<16x8xf32>
    %68 = vector.shape_cast %67 : vector<16x8xf32> to vector<1x16x8xf32>
    %69 = vector.extract_strided_slice %60 {offsets = [0, 32], sizes = [16, 8], strides = [1, 1]} : vector<16x64xf32> to vector<16x8xf32>
    %70 = vector.shape_cast %69 : vector<16x8xf32> to vector<1x16x8xf32>
    %71 = vector.extract_strided_slice %60 {offsets = [0, 40], sizes = [16, 8], strides = [1, 1]} : vector<16x64xf32> to vector<16x8xf32>
    %72 = vector.shape_cast %71 : vector<16x8xf32> to vector<1x16x8xf32>
    %73 = vector.extract_strided_slice %60 {offsets = [0, 48], sizes = [16, 8], strides = [1, 1]} : vector<16x64xf32> to vector<16x8xf32>
    %74 = vector.shape_cast %73 : vector<16x8xf32> to vector<1x16x8xf32>
    %75 = vector.extract_strided_slice %60 {offsets = [0, 56], sizes = [16, 8], strides = [1, 1]} : vector<16x64xf32> to vector<16x8xf32>
    %76 = vector.shape_cast %75 : vector<16x8xf32> to vector<1x16x8xf32>
    %77 = tpu.concatenate %62, %64, %66, %68, %70, %72, %74, %76 in 0 : vector<1x16x8xf32>, vector<1x16x8xf32>, vector<1x16x8xf32>, vector<1x16x8xf32>, vector<1x16x8xf32>, vector<1x16x8xf32>, vector<1x16x8xf32>, vector<1x16x8xf32> -> vector<8x16x8xf32>
    %78 = arith.truncf %77 : vector<8x16x8xf32> to vector<8x16x8xbf16>
    %c0_27 = arith.constant 0 : index
    %c0_28 = arith.constant 0 : index
    %c0_29 = arith.constant 0 : index
    %c0_30 = arith.constant 0 : index
    %79 = vector.load %arg10[%c0_27, %c0_28, %c0_29, %c0_30] : memref<1x8x16x8xbf16, #tpu.memory_space<vmem>>, vector<1x8x16x8xbf16>
    %80 = vector.shape_cast %79 : vector<1x8x16x8xbf16> to vector<8x16x8xbf16>
    %81 = vector.shape_cast %78 : vector<8x16x8xbf16> to vector<1x8x16x8xbf16>
    tpu.vector_store %arg10[%c0_27, %c0_28, %c0_29, %c0_30], %81 {strides = array<i32>} : memref<1x8x16x8xbf16, #tpu.memory_space<vmem>>, vector<1x8x16x8xbf16>,
    return
  }
  func.func @transform_0(%arg0: i32) -> (i32, i32, i32) {
    %c0_i32 = arith.constant 0 : i32
    %c0_i32_0 = arith.constant 0 : i32
    %c0_i32_1 = arith.constant 0 : i32
    return %arg0, %c0_i32, %c0_i32_0 : i32, i32, i32
  }
  func.func @transform_1(%arg0: i32) -> (i32, i32, i32) {
    %c0_i32 = arith.constant 0 : i32
    %c0_i32_0 = arith.constant 0 : i32
    %c0_i32_1 = arith.constant 0 : i32
    return %arg0, %c0_i32, %c0_i32_0 : i32, i32, i32
  }
  func.func @transform_2(%arg0: i32) -> (i32, i32) {
    %c0_i32 = arith.constant 0 : i32
    %c0_i32_0 = arith.constant 0 : i32
    %c0_i32_1 = arith.constant 0 : i32
    return %c0_i32, %c0_i32_0 : i32, i32
  }
  func.func @transform_3(%arg0: i32) -> (i32, i32) {
    %c0_i32 = arith.constant 0 : i32
    %c0_i32_0 = arith.constant 0 : i32
    %c0_i32_1 = arith.constant 0 : i32
    return %c0_i32, %c0_i32_0 : i32, i32
  }
  func.func @transform_4(%arg0: i32) -> (i32, i32) {
    %c0_i32 = arith.constant 0 : i32
    %c0_i32_0 = arith.constant 0 : i32
    %c0_i32_1 = arith.constant 0 : i32
    return %c0_i32, %c0_i32_0 : i32, i32
  }
  func.func @transform_5(%arg0: i32) -> (i32, i32) {
    %c0_i32 = arith.constant 0 : i32
    %c0_i32_0 = arith.constant 0 : i32
    %c0_i32_1 = arith.constant 0 : i32
    return %c0_i32, %c0_i32_0 : i32, i32
  }
  func.func @transform_6(%arg0: i32) -> (i32, i32) {
    %c0_i32 = arith.constant 0 : i32
    %c0_i32_0 = arith.constant 0 : i32
    %c0_i32_1 = arith.constant 0 : i32
    return %c0_i32, %c0_i32_0 : i32, i32
  }
  func.func @transform_7(%arg0: i32) -> (i32, i32) {
    %c0_i32 = arith.constant 0 : i32
    %c0_i32_0 = arith.constant 0 : i32
    %c0_i32_1 = arith.constant 0 : i32
    return %c0_i32, %c0_i32_0 : i32, i32
  }
  func.func @transform_8(%arg0: i32) -> (i32, i32, i32, i32) {
    %c0_i32 = arith.constant 0 : i32
    %c0_i32_0 = arith.constant 0 : i32
    %c0_i32_1 = arith.constant 0 : i32
    %c0_i32_2 = arith.constant 0 : i32
    return %arg0, %c0_i32, %c0_i32_0, %c0_i32_1 : i32, i32, i32, i32
  }
  func.func @transform_9(%arg0: i32) -> (i32, i32, i32, i32) {
    %c0_i32 = arith.constant 0 : i32
    %c0_i32_0 = arith.constant 0 : i32
    %c0_i32_1 = arith.constant 0 : i32
    %c0_i32_2 = arith.constant 0 : i32
    return %arg0, %c0_i32, %c0_i32_0, %c0_i32_1 : i32, i32, i32, i32
  }
}

</mosaic_0001>

<llo_original>
// kernel: tpu_custom_call.1
$region0: #{tpu_custom_call.1}
  #allocation0 [shape = 'u32[]', space=smem, size = 0x4, offset = 0x4, fixed_abs, tag = 'smem constant byte address 0x4 - core index']
  #allocation1 [shape = 'u32[144,128]{1,0:T(1,128)}', space=vmem, size = 0x12000, scoped, tag = 'internal scratch']
  %s0 = inlined_call_operand.hbm [shape: f32[2,8,32], index: 0, kind: input, shape index: {}]
  %s1 = inlined_call_operand.hbm [shape: f32[2,16,32], index: 1, kind: input, shape index: {}]
  %s2 = inlined_call_operand.hbm [shape: f32[1,32], index: 2, kind: input, shape index: {}]
  %s3 = inlined_call_operand.hbm [shape: f32[1,32], index: 3, kind: input, shape index: {}]
  %s4 = inlined_call_operand.hbm [shape: bf16[32,64], index: 4, kind: input, shape index: {}]
  %s5 = inlined_call_operand.hbm [shape: f32[1,64], index: 5, kind: input, shape index: {}]
  %s6 = inlined_call_operand.hbm [shape: bf16[32,64], index: 6, kind: input, shape index: {}]
  %s7 = inlined_call_operand.hbm [shape: f32[1,64], index: 7, kind: input, shape index: {}]
  %s8 = inlined_call_operand.hbm [shape: bf16[2,8,8,8], index: 8, kind: output, shape index: {0}]
  %s9 = inlined_call_operand.hbm [shape: bf16[2,8,16,8], index: 9, kind: output, shape index: {1}]
  %10 = xla_tuple %s8, %s9
  %s11 = sld [smem:[#allocation0]]
  $region105: #{tpu_custom_call.1} parent=0
    _
  %s13 = ssub.s32 1, %s11
  %s14 = scalar_select 0, %s13, %s11
  $region1: #{tpu_custom_call.1} parent=0
    #allocation2 [shape = 'u8[8192]{0}', space=vmem, size = 0x2000, scoped, tag = 'input window, operand 0']
    #allocation3 [shape = 's32[2]{0}', space=sflag, size = 0x8, scoped, tag = 'scoped memory for tpu_custom_call.1']
    #allocation4 [shape = 's32[2]{0}', space=sflag, size = 0x8, scoped, tag = 'scoped memory for tpu_custom_call.1']
    #allocation5 [shape = 'u8[16384]{0}', space=vmem, size = 0x4000, scoped, tag = 'input window, operand 1']
    #allocation6 [shape = 's32[2]{0}', space=sflag, size = 0x8, scoped, tag = 'scoped memory for tpu_custom_call.1']
    #allocation7 [shape = 'u8[512]{0}', space=vmem, size = 0x400, scoped, tag = 'input window, operand 2, single buffered']
    #allocation8 [shape = 'u8[512]{0}', space=vmem, size = 0x400, scoped, tag = 'input window, operand 3, single buffered']
    #allocation9 [shape = 's32[1]{0}', space=sflag, size = 0x4, scoped, tag = 'scoped memory for tpu_custom_call.1']
    #allocation10 [shape = 'u8[8192]{0}', space=vmem, size = 0x2000, scoped, tag = 'input window, operand 4, single buffered']
    #allocation11 [shape = 'u8[512]{0}', space=vmem, size = 0x400, scoped, tag = 'input window, operand 5, single buffered']
    #allocation12 [shape = 's32[1]{0}', space=sflag, size = 0x4, scoped, tag = 'scoped memory for tpu_custom_call.1']
    #allocation13 [shape = 'u8[8192]{0}', space=vmem, size = 0x2000, scoped, tag = 'input window, operand 6, single buffered']
    #allocation14 [shape = 'u8[512]{0}', space=vmem, size = 0x400, scoped, tag = 'input window, operand 7, single buffered']
    #allocation15 [shape = 's32[1]{0}', space=sflag, size = 0x4, scoped, tag = 'scoped memory for tpu_custom_call.1']
    #allocation16 [shape = 'u8[32768]{0}', space=vmem, size = 0x8000, scoped, tag = 'output window, operand 0']
    #allocation17 [shape = 'u8[65536]{0}', space=vmem, size = 0x10000, scoped, tag = 'output window, operand 1']
    #allocation18 [shape = 's32[2]{0}', space=sflag, size = 0x8, scoped, tag = 'scoped memory for tpu_custom_call.1']
    %15 = vsyncpa [#allocation3], 0
    %s16 = scalar_lea.sflag [#allocation3], 1
    %17 = vsyncpa %s16, 0
    %18 = vsyncpa [#allocation6], 0
    %s19 = scalar_lea.sflag [#allocation6], 1
    %20 = vsyncpa %s19, 0
    %21 = vsyncpa [#allocation9], 0
    %22 = vsyncpa [#allocation12], 0
    %23 = vsyncpa [#allocation15], 0
    %24 = vsyncpa [#allocation4], 0
    %s25 = scalar_lea.sflag [#allocation4], 1
    %26 = vsyncpa %s25, 0
    %27 = vsyncpa [#allocation18], 0
    %s28 = scalar_lea.sflag [#allocation18], 1
    %29 = vsyncpa %s28, 0
    loop: start=0, step=1, limit=4
    $region2: #{tpu_custom_call.1} parent=1 // loop_pre_header
      _
    $region3: #{tpu_custom_call.1} parent=1 // loop_header
      %s31 = sphi 0, %s35
      %p32 = scmp.ge.s32.totalorder %s31, 4
      %s41 = sphi 0, %s43
      %s44 = sphi 0, %s41
      %s45 = sphi 0, %s44
      %s61 = sphi 0, %s45
      %s67 = sphi 0, %s69
      %s70 = sphi 0, %s67
      %s71 = sphi 0, %s70
      %s87 = sphi 0, %s71
      %s91 = sphi 0, %s91
      %s93 = sphi 0, %s91
      %s94 = sphi 0, %s93
      %s108 = sphi 0, %s94
      %s112 = sphi 0, %s112
      %s114 = sphi 0, %s112
      %s115 = sphi 0, %s114
      %s129 = sphi 0, %s115
      %s133 = sphi 0, %s133
      %s135 = sphi 0, %s133
      %s136 = sphi 0, %s135
      %s150 = sphi 0, %s136
      %s154 = sphi 0, %s154
      %s156 = sphi 0, %s154
      %s157 = sphi 0, %s156
      %s171 = sphi 0, %s157
      %s175 = sphi 0, %s175
      %s177 = sphi 0, %s175
      %s178 = sphi 0, %s177
      %s192 = sphi 0, %s178
      %s196 = sphi 0, %s196
      %s198 = sphi 0, %s196
      %s199 = sphi 0, %s198
      %s213 = sphi 0, %s199
      %s219 = sphi 0, %s221
      %s222 = sphi 0, %s219
      %s223 = sphi 0, %s222
      %s239 = sphi 0, %s223
      %s245 = sphi 0, %s247
      %s248 = sphi 0, %s245
      %s249 = sphi 0, %s248
      %s265 = sphi 0, %s249
    $region4: #{tpu_custom_call.1} parent=1 // loop_header_branch
      %34 = sbr.rel (%p32) target = $region8
    $region5: #{tpu_custom_call.1} parent=1 // loop_body
      %s36 = ssub.s32 %s31, 1
      %s37 = ssub.s32 %s31, 2
      %s38 = sadd.s32 %s31, 1
      %s39 = ssub.s32 %s31, %s38
      %p40 = scmp.eq.s32.totalorder %s39, 0
      %s42 = sadd.s32 %s41, 1
      %s43 = scalar_select %p40, %s41, %s42
      %p46 = pneg %p40
      %p47 = scmp.eq.s32.totalorder %s31, 1
      %p48 = por %p46, %p47
      %p49 = scmp.ne.s32.totalorder %s41, %s44
      %p50 = scmp.eq.s32.totalorder %s31, 0
      %p51 = por %p49, %p50
      %p52 = scmp.ne.s32.totalorder %s41, %s44
      %p53 = scmp.eq.s32.totalorder %s36, 1
      %p54 = por %p52, %p53
      %p55 = scmp.ne.s32.totalorder %s44, %s45
      %p56 = scmp.eq.s32.totalorder %s36, 0
      %p57 = por %p55, %p56
      %p58 = scmp.ne.s32.totalorder %s44, %s45
      %p59 = scmp.eq.s32.totalorder %s37, 1
      %p60 = por %p58, %p59
      %p62 = scmp.ne.s32.totalorder %s45, %s61
      %p63 = scmp.eq.s32.totalorder %s37, 0
      %p64 = por %p62, %p63
      %s65 = ssub.s32 %s31, %s38
      %p66 = scmp.eq.s32.totalorder %s65, 0
      %s68 = sadd.s32 %s67, 1
      %s69 = scalar_select %p66, %s67, %s68
      %p72 = pneg %p66
      %p73 = scmp.eq.s32.totalorder %s31, 1
      %p74 = por %p72, %p73
      %p75 = scmp.ne.s32.totalorder %s67, %s70
      %p76 = scmp.eq.s32.totalorder %s31, 0
      %p77 = por %p75, %p76
      %p78 = scmp.ne.s32.totalorder %s67, %s70
      %p79 = scmp.eq.s32.totalorder %s36, 1
      %p80 = por %p78, %p79
      %p81 = scmp.ne.s32.totalorder %s70, %s71
      %p82 = scmp.eq.s32.totalorder %s36, 0
      %p83 = por %p81, %p82
      %p84 = scmp.ne.s32.totalorder %s70, %s71
      %p85 = scmp.eq.s32.totalorder %s37, 1
      %p86 = por %p84, %p85
      %p88 = scmp.ne.s32.totalorder %s71, %s87
      %p89 = scmp.eq.s32.totalorder %s37, 0
      %p90 = por %p88, %p89
      %s92 = sadd.s32 %s91, 1
      %p95 = scmp.eq.s32.totalorder %s31, 1
      %p96 = scmp.ne.s32.totalorder %s91, %s93
      %p97 = scmp.eq.s32.totalorder %s31, 0
      %p98 = por %p96, %p97
      %p99 = scmp.ne.s32.totalorder %s91, %s93
      %p100 = scmp.eq.s32.totalorder %s36, 1
      %p101 = por %p99, %p100
      %p102 = scmp.ne.s32.totalorder %s93, %s94
      %p103 = scmp.eq.s32.totalorder %s36, 0
      %p104 = por %p102, %p103
      %p105 = scmp.ne.s32.totalorder %s93, %s94
      %p106 = scmp.eq.s32.totalorder %s37, 1
      %p107 = por %p105, %p106
      %p109 = scmp.ne.s32.totalorder %s94, %s108
      %p110 = scmp.eq.s32.totalorder %s37, 0
      %p111 = por %p109, %p110
      %s113 = sadd.s32 %s112, 1
      %p116 = scmp.eq.s32.totalorder %s31, 1
      %p117 = scmp.ne.s32.totalorder %s112, %s114
      %p118 = scmp.eq.s32.totalorder %s31, 0
      %p119 = por %p117, %p118
      %p120 = scmp.ne.s32.totalorder %s112, %s114
      %p121 = scmp.eq.s32.totalorder %s36, 1
      %p122 = por %p120, %p121
      %p123 = scmp.ne.s32.totalorder %s114, %s115
      %p124 = scmp.eq.s32.totalorder %s36, 0
      %p125 = por %p123, %p124
      %p126 = scmp.ne.s32.totalorder %s114, %s115
      %p127 = scmp.eq.s32.totalorder %s37, 1
      %p128 = por %p126, %p127
      %p130 = scmp.ne.s32.totalorder %s115, %s129
      %p131 = scmp.eq.s32.totalorder %s37, 0
      %p132 = por %p130, %p131
      %s134 = sadd.s32 %s133, 1
      %p137 = scmp.eq.s32.totalorder %s31, 1
      %p138 = scmp.ne.s32.totalorder %s133, %s135
      %p139 = scmp.eq.s32.totalorder %s31, 0
      %p140 = por %p138, %p139
      %p141 = scmp.ne.s32.totalorder %s133, %s135
      %p142 = scmp.eq.s32.totalorder %s36, 1
      %p143 = por %p141, %p142
      %p144 = scmp.ne.s32.totalorder %s135, %s136
      %p145 = scmp.eq.s32.totalorder %s36, 0
      %p146 = por %p144, %p145
      %p147 = scmp.ne.s32.totalorder %s135, %s136
      %p148 = scmp.eq.s32.totalorder %s37, 1
      %p149 = por %p147, %p148
      %p151 = scmp.ne.s32.totalorder %s136, %s150
      %p152 = scmp.eq.s32.totalorder %s37, 0
      %p153 = por %p151, %p152
      %s155 = sadd.s32 %s154, 1
      %p158 = scmp.eq.s32.totalorder %s31, 1
      %p159 = scmp.ne.s32.totalorder %s154, %s156
      %p160 = scmp.eq.s32.totalorder %s31, 0
      %p161 = por %p159, %p160
      %p162 = scmp.ne.s32.totalorder %s154, %s156
      %p163 = scmp.eq.s32.totalorder %s36, 1
      %p164 = por %p162, %p163
      %p165 = scmp.ne.s32.totalorder %s156, %s157
      %p166 = scmp.eq.s32.totalorder %s36, 0
      %p167 = por %p165, %p166
      %p168 = scmp.ne.s32.totalorder %s156, %s157
      %p169 = scmp.eq.s32.totalorder %s37, 1
      %p170 = por %p168, %p169
      %p172 = scmp.ne.s32.totalorder %s157, %s171
      %p173 = scmp.eq.s32.totalorder %s37, 0
      %p174 = por %p172, %p173
      %s176 = sadd.s32 %s175, 1
      %p179 = scmp.eq.s32.totalorder %s31, 1
      %p180 = scmp.ne.s32.totalorder %s175, %s177
      %p181 = scmp.eq.s32.totalorder %s31, 0
      %p182 = por %p180, %p181
      %p183 = scmp.ne.s32.totalorder %s175, %s177
      %p184 = scmp.eq.s32.totalorder %s36, 1
      %p185 = por %p183, %p184
      %p186 = scmp.ne.s32.totalorder %s177, %s178
      %p187 = scmp.eq.s32.totalorder %s36, 0
      %p188 = por %p186, %p187
      %p189 = scmp.ne.s32.totalorder %s177, %s178
      %p190 = scmp.eq.s32.totalorder %s37, 1
      %p191 = por %p189, %p190
      %p193 = scmp.ne.s32.totalorder %s178, %s192
      %p194 = scmp.eq.s32.totalorder %s37, 0
      %p195 = por %p193, %p194
      %s197 = sadd.s32 %s196, 1
      %p200 = scmp.eq.s32.totalorder %s31, 1
      %p201 = scmp.ne.s32.totalorder %s196, %s198
      %p202 = scmp.eq.s32.totalorder %s31, 0
      %p203 = por %p201, %p202
      %p204 = scmp.ne.s32.totalorder %s196, %s198
      %p205 = scmp.eq.s32.totalorder %s36, 1
      %p206 = por %p204, %p205
      %p207 = scmp.ne.s32.totalorder %s198, %s199
      %p208 = scmp.eq.s32.totalorder %s36, 0
      %p209 = por %p207, %p208
      %p210 = scmp.ne.s32.totalorder %s198, %s199
      %p211 = scmp.eq.s32.totalorder %s37, 1
      %p212 = por %p210, %p211
      %p214 = scmp.ne.s32.totalorder %s199, %s213
      %p215 = scmp.eq.s32.totalorder %s37, 0
      %p216 = por %p214, %p215
      %s217 = ssub.s32 %s31, %s38
      %p218 = scmp.eq.s32.totalorder %s217, 0
      %s220 = sadd.s32 %s219, 1
      %s221 = scalar_select %p218, %s219, %s220
      %p224 = pneg %p218
      %p225 = scmp.eq.s32.totalorder %s31, 1
      %p226 = por %p224, %p225
      %p227 = scmp.ne.s32.totalorder %s219, %s222
      %p228 = scmp.eq.s32.totalorder %s31, 0
      %p229 = por %p227, %p228
      %p230 = scmp.ne.s32.totalorder %s219, %s222
      %p231 = scmp.eq.s32.totalorder %s36, 1
      %p232 = por %p230, %p231
      %p233 = scmp.ne.s32.totalorder %s222, %s223
      %p234 = scmp.eq.s32.totalorder %s36, 0
      %p235 = por %p233, %p234
      %p236 = scmp.ne.s32.totalorder %s222, %s223
      %p237 = scmp.eq.s32.totalorder %s37, 1
      %p238 = por %p236, %p237
      %p240 = scmp.ne.s32.totalorder %s223, %s239
      %p241 = scmp.eq.s32.totalorder %s37, 0
      %p242 = por %p240, %p241
      %s243 = ssub.s32 %s31, %s38
      %p244 = scmp.eq.s32.totalorder %s243, 0
      %s246 = sadd.s32 %s245, 1
      %s247 = scalar_select %p244, %s245, %s246
      %p250 = pneg %p244
      %p251 = scmp.eq.s32.totalorder %s31, 1
      %p252 = por %p250, %p251
      %p253 = scmp.ne.s32.totalorder %s245, %s248
      %p254 = scmp.eq.s32.totalorder %s31, 0
      %p255 = por %p253, %p254
      %p256 = scmp.ne.s32.totalorder %s245, %s248
      %p257 = scmp.eq.s32.totalorder %s36, 1
      %p258 = por %p256, %p257
      %p259 = scmp.ne.s32.totalorder %s248, %s249
      %p260 = scmp.eq.s32.totalorder %s36, 0
      %p261 = por %p259, %p260
      %p262 = scmp.ne.s32.totalorder %s248, %s249
      %p263 = scmp.eq.s32.totalorder %s37, 1
      %p264 = por %p262, %p263
      %p266 = scmp.ne.s32.totalorder %s249, %s265
      %p267 = scmp.eq.s32.totalorder %s37, 0
      %p268 = por %p266, %p267
      %p269 = scmp.le.s32.totalorder 1, %s31
      %p270 = scmp.lt.s32.totalorder %s31, 3
      %p271 = pnand %p269, %p270
      %p272 = pneg %p271
      // Predicated region
      $region9: #{tpu_custom_call.1} parent=5 // pred_check
        _
      $region10: #{tpu_custom_call.1} parent=5 // pred_check_branch
        %274 = sbr.rel (%p271) target = $region12
      $region11: #{tpu_custom_call.1} parent=5 // pred_region
        %s275 = ssub.s32 %s31, 1
        // Predicated region
        $region13: #{tpu_custom_call.1} parent=11 // pred_check
          %p276 = pneg %p104
        $region14: #{tpu_custom_call.1} parent=11 // pred_check_branch
          %278 = sbr.rel (%p276) target = $region16
        $region15: #{tpu_custom_call.1} parent=11 // pred_region
          %s280 = ssub.s32 16, 16
          %281 = vsyncadd [#allocation6], %s280
          %s283 = sshll.u32 [#allocation7], 4
          %s284 = int_to_ptr.vmem [resolvable:$true] %s283
          %286 = dma.hbm_to_vmem [thread:$0]  %s2, 16, %s284, [#allocation6]
        $region16: #{tpu_custom_call.1} parent=11 // pred_fallthru
          _
        // Predicated region
        $region17: #{tpu_custom_call.1} parent=11 // pred_check
          %p287 = pneg %p125
        $region18: #{tpu_custom_call.1} parent=11 // pred_check_branch
          %289 = sbr.rel (%p287) target = $region20
        $region19: #{tpu_custom_call.1} parent=11 // pred_region
          %s291 = ssub.s32 16, 16
          %292 = vsyncadd [#allocation9], %s291
          %s294 = sshll.u32 [#allocation8], 4
          %s295 = int_to_ptr.vmem [resolvable:$true] %s294
          %297 = dma.hbm_to_vmem [thread:$0]  %s3, 16, %s295, [#allocation9]
        $region20: #{tpu_custom_call.1} parent=11 // pred_fallthru
          _
        // Predicated region
        $region21: #{tpu_custom_call.1} parent=11 // pred_check
          %p298 = pneg %p146
        $region22: #{tpu_custom_call.1} parent=11 // pred_check_branch
          %300 = sbr.rel (%p298) target = $region24
        $region23: #{tpu_custom_call.1} parent=11 // pred_region
          %s302 = ssub.s32 256, 256
          %303 = vsyncadd [#allocation9], %s302
          %s304 = sshll.u32 [#allocation10], 4
          %s305 = int_to_ptr.vmem [resolvable:$true] %s304
          %310 = dma.hbm_to_vmem [thread:$0]  %s4, 256, %s305, [#allocation9], 64, 64, 4
        $region24: #{tpu_custom_call.1} parent=11 // pred_fallthru
          _
        // Predicated region
        $region25: #{tpu_custom_call.1} parent=11 // pred_check
          %p311 = pneg %p167
        $region26: #{tpu_custom_call.1} parent=11 // pred_check_branch
          %313 = sbr.rel (%p311) target = $region28
        $region27: #{tpu_custom_call.1} parent=11 // pred_region
          %s315 = ssub.s32 16, 16
          %316 = vsyncadd [#allocation12], %s315
          %s318 = sshll.u32 [#allocation11], 4
          %s319 = int_to_ptr.vmem [resolvable:$true] %s318
          %321 = dma.hbm_to_vmem [thread:$0]  %s5, 16, %s319, [#allocation12]
        $region28: #{tpu_custom_call.1} parent=11 // pred_fallthru
          _
        // Predicated region
        $region29: #{tpu_custom_call.1} parent=11 // pred_check
          %p322 = pneg %p188
        $region30: #{tpu_custom_call.1} parent=11 // pred_check_branch
          %324 = sbr.rel (%p322) target = $region32
        $region31: #{tpu_custom_call.1} parent=11 // pred_region
          %s326 = ssub.s32 256, 256
          %327 = vsyncadd [#allocation12], %s326
          %s328 = sshll.u32 [#allocation13], 4
          %s329 = int_to_ptr.vmem [resolvable:$true] %s328
          %334 = dma.hbm_to_vmem [thread:$0]  %s6, 256, %s329, [#allocation12], 64, 64, 4
        $region32: #{tpu_custom_call.1} parent=11 // pred_fallthru
          _
        // Predicated region
        $region33: #{tpu_custom_call.1} parent=11 // pred_check
          %p335 = pneg %p209
        $region34: #{tpu_custom_call.1} parent=11 // pred_check_branch
          %337 = sbr.rel (%p335) target = $region36
        $region35: #{tpu_custom_call.1} parent=11 // pred_region
          %s339 = ssub.s32 16, 16
          %340 = vsyncadd [#allocation15], %s339
          %s342 = sshll.u32 [#allocation14], 4
          %s343 = int_to_ptr.vmem [resolvable:$true] %s342
          %345 = dma.hbm_to_vmem [thread:$0]  %s7, 16, %s343, [#allocation15]
        $region36: #{tpu_custom_call.1} parent=11 // pred_fallthru
          _
      $region12: #{tpu_custom_call.1} parent=5 // pred_fallthru
        _
      %p346 = scmp.lt.s32.totalorder %s31, 2
      // Predicated region
      $region37: #{tpu_custom_call.1} parent=5 // pred_check
        %p347 = pneg %p346
      $region38: #{tpu_custom_call.1} parent=5 // pred_check_branch
        %349 = sbr.rel (%p347) target = $region40
      $region39: #{tpu_custom_call.1} parent=5 // pred_region
        // Predicated region
        $region41: #{tpu_custom_call.1} parent=39 // pred_check
          %p350 = pneg %p51
        $region42: #{tpu_custom_call.1} parent=39 // pred_check_branch
          %352 = sbr.rel (%p350) target = $region44
        $region43: #{tpu_custom_call.1} parent=39 // pred_region
          %s353 = sand.u32 %s41, 1
          %s354 = scalar_lea.sflag [#allocation3], %s353
          %s355 = sand.u32 %s41, 1
          %s356 = smul.addr %s355, 8
          %s357 = scalar_lea.vmem [#allocation2], %s356
          %s359 = ssub.s32 128, 128
          %360 = vsyncadd %s354, %s359
          %s361 = smul.addr %s31, 128
          %s362 = scalar_lea.hbm %s0, %s361
          %s364 = sshll.u32 %s357, 4
          %s365 = int_to_ptr.vmem [resolvable:$true] %s364
          %367 = dma.hbm_to_vmem [thread:$0]  %s362, 128, %s365, %s354
        $region44: #{tpu_custom_call.1} parent=39 // pred_fallthru
          _
        // Predicated region
        $region45: #{tpu_custom_call.1} parent=39 // pred_check
          %p368 = pneg %p77
        $region46: #{tpu_custom_call.1} parent=39 // pred_check_branch
          %370 = sbr.rel (%p368) target = $region48
        $region47: #{tpu_custom_call.1} parent=39 // pred_region
          %s371 = sand.u32 %s31, 1
          %s372 = scalar_lea.sflag [#allocation6], %s371
          %s373 = sand.u32 %s67, 1
          %s374 = smul.addr %s373, 16
          %s375 = scalar_lea.vmem [#allocation5], %s374
          %s377 = ssub.s32 256, 256
          %378 = vsyncadd %s372, %s377
          %s379 = smul.addr %s31, 2
          %s380 = smul.addr %s379, 128
          %s381 = scalar_lea.hbm %s1, %s380
          %s382 = sshll.u32 %s375, 4
          %s383 = int_to_ptr.vmem [resolvable:$true] %s382
          %388 = dma.hbm_to_vmem [thread:$0]  %s381, 256, %s383, %s372, 128, 128, 8
        $region48: #{tpu_custom_call.1} parent=39 // pred_fallthru
          _
      $region40: #{tpu_custom_call.1} parent=5 // pred_fallthru
        _
      %p389 = scmp.le.s32.totalorder 1, %s31
      %p390 = scmp.lt.s32.totalorder %s31, 3
      %p391 = pnand %p389, %p390
      %p392 = pneg %p391
      // Predicated region
      $region49: #{tpu_custom_call.1} parent=5 // pred_check
        _
      $region50: #{tpu_custom_call.1} parent=5 // pred_check_branch
        %394 = sbr.rel (%p391) target = $region52
      $region51: #{tpu_custom_call.1} parent=5 // pred_region
        %s395 = ssub.s32 %s31, 1
        %s396 = sand.u32 %s44, 1
        %s397 = scalar_lea.sflag [#allocation3], %s396
        %s398 = sand.u32 %s44, 1
        %s399 = smul.addr %s398, 8
        %s400 = scalar_lea.vmem [#allocation2], %s399
        // Predicated region
        $region53: #{tpu_custom_call.1} parent=51 // pred_check
          %p401 = pneg %p57
        $region54: #{tpu_custom_call.1} parent=51 // pred_check_branch
          %403 = sbr.rel (%p401) target = $region56
        $region55: #{tpu_custom_call.1} parent=51 // pred_region
          %404 = dma.done %s397, 128
        $region56: #{tpu_custom_call.1} parent=51 // pred_fallthru
          _
        %s405 = sand.u32 %s36, 1
        %s406 = scalar_lea.sflag [#allocation6], %s405
        %s407 = sand.u32 %s70, 1
        %s408 = smul.addr %s407, 16
        %s409 = scalar_lea.vmem [#allocation5], %s408
        // Predicated region
        $region57: #{tpu_custom_call.1} parent=51 // pred_check
          %p410 = pneg %p83
        $region58: #{tpu_custom_call.1} parent=51 // pred_check_branch
          %412 = sbr.rel (%p410) target = $region60
        $region59: #{tpu_custom_call.1} parent=51 // pred_region
          %413 = dma.done %s406, 256
        $region60: #{tpu_custom_call.1} parent=51 // pred_fallthru
          _
        // Predicated region
        $region61: #{tpu_custom_call.1} parent=51 // pred_check
          %p414 = pneg %p104
        $region62: #{tpu_custom_call.1} parent=51 // pred_check_branch
          %416 = sbr.rel (%p414) target = $region64
        $region63: #{tpu_custom_call.1} parent=51 // pred_region
          %417 = dma.done [#allocation6], 16
        $region64: #{tpu_custom_call.1} parent=51 // pred_fallthru
          _
        // Predicated region
        $region65: #{tpu_custom_call.1} parent=51 // pred_check
          %p418 = pneg %p125
        $region66: #{tpu_custom_call.1} parent=51 // pred_check_branch
          %420 = sbr.rel (%p418) target = $region68
        $region67: #{tpu_custom_call.1} parent=51 // pred_region
          %421 = dma.done [#allocation9], 16
        $region68: #{tpu_custom_call.1} parent=51 // pred_fallthru
          _
        // Predicated region
        $region69: #{tpu_custom_call.1} parent=51 // pred_check
          %p422 = pneg %p146
        $region70: #{tpu_custom_call.1} parent=51 // pred_check_branch
          %424 = sbr.rel (%p422) target = $region72
        $region71: #{tpu_custom_call.1} parent=51 // pred_region
          %425 = dma.done [#allocation9], 256
        $region72: #{tpu_custom_call.1} parent=51 // pred_fallthru
          _
        // Predicated region
        $region73: #{tpu_custom_call.1} parent=51 // pred_check
          %p426 = pneg %p167
        $region74: #{tpu_custom_call.1} parent=51 // pred_check_branch
          %428 = sbr.rel (%p426) target = $region76
        $region75: #{tpu_custom_call.1} parent=51 // pred_region
          %429 = dma.done [#allocation12], 16
        $region76: #{tpu_custom_call.1} parent=51 // pred_fallthru
          _
        // Predicated region
        $region77: #{tpu_custom_call.1} parent=51 // pred_check
          %p430 = pneg %p188
        $region78: #{tpu_custom_call.1} parent=51 // pred_check_branch
          %432 = sbr.rel (%p430) target = $region80
        $region79: #{tpu_custom_call.1} parent=51 // pred_region
          %433 = dma.done [#allocation12], 256
        $region80: #{tpu_custom_call.1} parent=51 // pred_fallthru
          _
        // Predicated region
        $region81: #{tpu_custom_call.1} parent=51 // pred_check
          %p434 = pneg %p209
        $region82: #{tpu_custom_call.1} parent=51 // pred_check_branch
          %436 = sbr.rel (%p434) target = $region84
        $region83: #{tpu_custom_call.1} parent=51 // pred_region
          %437 = dma.done [#allocation15], 16
        $region84: #{tpu_custom_call.1} parent=51 // pred_fallthru
          _
        %s438 = sand.u32 %s44, 1
        %s439 = scalar_lea.sflag [#allocation3], %s438
        %s440 = sand.u32 %s44, 1
        %s441 = smul.addr %s440, 8
        %s442 = scalar_lea.vmem [#allocation2], %s441
        %p443 = pneg %p57
        %p444 = pneg %p54
        %s445 = sand.u32 %s36, 1
        %s446 = scalar_lea.sflag [#allocation6], %s445
        %s447 = sand.u32 %s70, 1
        %s448 = smul.addr %s447, 16
        %s449 = scalar_lea.vmem [#allocation5], %s448
        %p450 = pneg %p83
        %p451 = pneg %p80
        %p452 = pneg %p104
        %p453 = pneg %p101
        %p454 = pneg %p125
        %p455 = pneg %p122
        %p456 = pneg %p146
        %p457 = pneg %p143
        %p458 = pneg %p167
        %p459 = pneg %p164
        %p460 = pneg %p188
        %p461 = pneg %p185
        %p462 = pneg %p209
        %p463 = pneg %p206
        %p464 = pneg %p235
        %p465 = pneg %p232
        %s466 = sand.u32 %s222, 1
        %s467 = scalar_lea.sflag [#allocation4], %s466
        %s468 = sand.u32 %s222, 1
        %s469 = smul.addr %s468, 32
        %s470 = scalar_lea.vmem [#allocation16], %s469
        %p471 = pneg %p261
        %p472 = pneg %p258
        %s473 = sand.u32 %s248, 1
        %s474 = scalar_lea.sflag [#allocation18], %s473
        %s475 = sand.u32 %s248, 1
        %s476 = smul.addr %s475, 64
        %s477 = scalar_lea.vmem [#allocation17], %s476
        %v479 = vld [vmem:[%s400] sm:$0xff]
        %v480 = vld [vmem:[#allocation7] sm:$0x1]
        %v481 = vld [vmem:[#allocation8] sm:$0x1]
        %vm482 = vcmask 261120
        %v483 = vsel %vm482, %v479, 0.0
        %484 = vadd.xlane.f32.xlu0 %v483
        %v485 = vpop.xlane.xlu0 %484
        %v486 = vrcp.pop 32.0
        %v487 = vmul.f32 %v485, %v486
        %v488 = vsub.f32 %v479, %v487
        %v489 = vmul.f32 %v488, %v488
        %v490 = vsel %vm482, %v489, 0.0
        %491 = vadd.xlane.f32.xlu0 %v490
        %v492 = vpop.xlane.xlu0 %491
        %v493 = vmul.f32 %v492, %v486
        %v494 = vadd.f32 %v493, 1e-05
        %v495 = vrsqrt.pop %v494
        %v496 = vmul.f32 %v488, %v495
        %v498 = vlaneseq
        %v499 = vshrl.u32 %v498, 7
        %v500 = vsub.s32 0, %v499
        %v501 = vrot.slane %v480, %v500
        %v503 = vmul.f32 %v496, %v501
        %v505 = vlaneseq
        %v506 = vshrl.u32 %v505, 7
        %v507 = vsub.s32 0, %v506
        %v508 = vrot.slane %v481, %v507
        %v510 = vadd.f32 %v503, %v508
        %v511 = vpack.c.bf16 %v510, %v510
        %v512 = vld [vmem:[#allocation10] sm:$0xf]
        %v513 = vld [vmem:[#allocation10 + $0x4] sm:$0xf]
        %v514 = vld [vmem:[#allocation10 + $0x8] sm:$0xf]
        %v515 = vld [vmem:[#allocation10 + $0xc] sm:$0xf]
        %v516 = vld [vmem:[#allocation11] sm:$0x1]
        %v518 = vlaneseq
        %v519 = vshrl.u32 %v518, 7
        %v520 = vsub.s32 0, %v519
        %v521 = vrot.slane %v516, %v520
        %v527 = vunpack.c.l.b16 %v512
        %v528 = vunpack.c.l.b16 %v513
        %v529 = vunpack.c.l.b16 %v514
        %v530 = vunpack.c.l.b16 %v515
        %v531 = vpack.c.b16 %v528, %v527
        %v532 = vpack.c.b16 %v530, %v529
        %v536 = vsel %vm482, %v511, 0
        %538 = vmatprep.subr.bf16.mxu0 0
        %539 = vmatpush1.bf16.msra.mxu0 %v531
        %540 = vmatprep.subr.bf16.mxu0 0
        %541 = vmatpush1.bf16.msra.mxu0 %v532
        %542 = vmatprep.subr.bf16.mxu0 0
        %543 = vmatpush1.bf16.msra.mxu0 0
        %544 = vmatprep.subr.bf16.mxu0 0
        %545 = vmatpush1.bf16.msra.mxu0 0
        %546 = vmatprep.subr.bf16.mxu0 0
        %547 = vmatpush1.bf16.msra.mxu0 0
        %548 = vmatprep.subr.bf16.mxu0 0
        %549 = vmatpush1.bf16.msra.mxu0 0
        %550 = vmatprep.subr.bf16.mxu0 0
        %551 = vmatpush1.bf16.msra.mxu0 0
        %552 = vmatprep.subr.bf16.mxu0 0
        %553 = vmatpush1.bf16.msra.mxu0 0
        %554 = vmatprep.subr.bf16.mxu0 0
        %555 = vmatpush1.bf16.msra.mxu0 0
        %556 = vmatprep.subr.bf16.mxu0 0
        %557 = vmatpush1.bf16.msra.mxu0 0
        %558 = vmatprep.subr.bf16.mxu0 0
        %559 = vmatpush1.bf16.msra.mxu0 0
        %560 = vmatprep.subr.bf16.mxu0 0
        %561 = vmatpush1.bf16.msra.mxu0 0
        %562 = vmatprep.subr.bf16.mxu0 0
        %563 = vmatpush1.bf16.msra.mxu0 0
        %564 = vmatprep.subr.bf16.mxu0 0
        %565 = vmatpush1.bf16.msra.mxu0 0
        %566 = vmatprep.subr.bf16.mxu0 0
        %567 = vmatpush1.bf16.msra.mxu0 0
        %568 = vmatprep.subr.bf16.mxu0 0
        %569 = vmatpush1.bf16.msra.mxu0 0
        %570 = vmatprep.mubr.bf16.mxu0 0
        %571 = vmatmul.mubr.bf16.gmra.mrb[0].mxu0 %v536
        %v572 = vpop.f32.mrb[0].mxu0
        %v573 = vadd.f32 %v521, %v572
        %v574 = vpop.f32.mrb[0].mxu0
        %v575 = vpop.f32.mrb[0].mxu0
        %v576 = vpop.f32.mrb[0].mxu0
        %577 = vdwg.mxu0
        %579 = vrot.lane.b32.xlu0 %v573, 120
        %v580 = vpop.permute.xlu0 %579
        %582 = vrot.lane.b32.xlu0 %v573, 112
        %v583 = vpop.permute.xlu0 %582
        %585 = vrot.lane.b32.xlu0 %v573, 104
        %v586 = vpop.permute.xlu0 %585
        %588 = vrot.lane.b32.xlu0 %v573, 96
        %v589 = vpop.permute.xlu0 %588
        %591 = vrot.lane.b32.xlu0 %v573, 88
        %v592 = vpop.permute.xlu0 %591
        %594 = vrot.lane.b32.xlu0 %v573, 80
        %v595 = vpop.permute.xlu0 %594
        %597 = vrot.lane.b32.xlu0 %v573, 72
        %v598 = vpop.permute.xlu0 %597
        %v600 = vpack.c.bf16 %v573, %v573
        %v601 = vpack.c.bf16 %v580, %v580
        %v602 = vpack.c.bf16 %v583, %v583
        %v603 = vpack.c.bf16 %v586, %v586
        %v604 = vpack.c.bf16 %v589, %v589
        %v605 = vpack.c.bf16 %v592, %v592
        %v606 = vpack.c.bf16 %v595, %v595
        %v607 = vpack.c.bf16 %v598, %v598
        %vm608 = vcmask 60416
        %609 = vst.msk [vmem:[%s470] sm:$0xf] %vm608, %v600
        %610 = vst.msk [vmem:[%s470 + $0x4] sm:$0xf] %vm608, %v601
        %611 = vst.msk [vmem:[%s470 + $0x8] sm:$0xf] %vm608, %v602
        %612 = vst.msk [vmem:[%s470 + $0xc] sm:$0xf] %vm608, %v603
        %613 = vst.msk [vmem:[%s470 + $0x10] sm:$0xf] %vm608, %v604
        %614 = vst.msk [vmem:[%s470 + $0x14] sm:$0xf] %vm608, %v605
        %615 = vst.msk [vmem:[%s470 + $0x18] sm:$0xf] %vm608, %v606
        %616 = vst.msk [vmem:[%s470 + $0x1c] sm:$0xf] %vm608, %v607
        %v617 = vld [vmem:[%s409] sm:$0xff]
        %v618 = vld [vmem:[%s409 + $0x8] sm:$0xff]
        %v619 = vpack.c.bf16 %v618, %v617
        %v620 = vld [vmem:[#allocation13] sm:$0xf]
        %v621 = vld [vmem:[#allocation13 + $0x4] sm:$0xf]
        %v622 = vld [vmem:[#allocation13 + $0x8] sm:$0xf]
        %v623 = vld [vmem:[#allocation13 + $0xc] sm:$0xf]
        %v624 = vld [vmem:[#allocation14] sm:$0x1]
        %v626 = vlaneseq
        %v627 = vshrl.u32 %v626, 7
        %v628 = vsub.s32 0, %v627
        %v629 = vrot.slane %v624, %v628
        %v635 = vunpack.c.l.b16 %v620
        %v636 = vunpack.c.l.b16 %v621
        %v637 = vunpack.c.l.b16 %v622
        %v638 = vunpack.c.l.b16 %v623
        %v639 = vpack.c.b16 %v636, %v635
        %v640 = vpack.c.b16 %v638, %v637
        %v644 = vsel %vm482, %v619, 0
        %646 = vmatprep.subr.bf16.mxu0 0
        %647 = vmatpush1.bf16.msra.mxu0 %v639
        %648 = vmatprep.subr.bf16.mxu0 0
        %649 = vmatpush1.bf16.msra.mxu0 %v640
        %650 = vmatprep.subr.bf16.mxu0 0
        %651 = vmatpush1.bf16.msra.mxu0 0
        %652 = vmatprep.subr.bf16.mxu0 0
        %653 = vmatpush1.bf16.msra.mxu0 0
        %654 = vmatprep.subr.bf16.mxu0 0
        %655 = vmatpush1.bf16.msra.mxu0 0
        %656 = vmatprep.subr.bf16.mxu0 0
        %657 = vmatpush1.bf16.msra.mxu0 0
        %658 = vmatprep.subr.bf16.mxu0 0
        %659 = vmatpush1.bf16.msra.mxu0 0
        %660 = vmatprep.subr.bf16.mxu0 0
        %661 = vmatpush1.bf16.msra.mxu0 0
        %662 = vmatprep.subr.bf16.mxu0 0
        %663 = vmatpush1.bf16.msra.mxu0 0
        %664 = vmatprep.subr.bf16.mxu0 0
        %665 = vmatpush1.bf16.msra.mxu0 0
        %666 = vmatprep.subr.bf16.mxu0 0
        %667 = vmatpush1.bf16.msra.mxu0 0
        %668 = vmatprep.subr.bf16.mxu0 0
        %669 = vmatpush1.bf16.msra.mxu0 0
        %670 = vmatprep.subr.bf16.mxu0 0
        %671 = vmatpush1.bf16.msra.mxu0 0
        %672 = vmatprep.subr.bf16.mxu0 0
        %673 = vmatpush1.bf16.msra.mxu0 0
        %674 = vmatprep.subr.bf16.mxu0 0
        %675 = vmatpush1.bf16.msra.mxu0 0
        %676 = vmatprep.subr.bf16.mxu0 0
        %677 = vmatpush1.bf16.msra.mxu0 0
        %678 = vmatprep.mubr.bf16.mxu0 0
        %679 = vmatmul.mubr.bf16.gmra.mrb[0].mxu0 %v644
        %v680 = vpop.f32.mrb[0].mxu0
        %v681 = vadd.f32 %v629, %v680
        %v682 = vpop.f32.mrb[0].mxu0
        %v683 = vpop.f32.mrb[0].mxu0
        %v684 = vadd.f32 %v629, %v683
        %v685 = vpop.f32.mrb[0].mxu0
        %686 = vdwg.mxu0
        %689 = vrot.lane.b32.xlu0 %v681, 120
        %v690 = vpop.permute.xlu0 %689
        %691 = vrot.lane.b32.xlu0 %v684, 120
        %v692 = vpop.permute.xlu0 %691
        %695 = vrot.lane.b32.xlu0 %v681, 112
        %v696 = vpop.permute.xlu0 %695
        %697 = vrot.lane.b32.xlu0 %v684, 112
        %v698 = vpop.permute.xlu0 %697
        %701 = vrot.lane.b32.xlu0 %v681, 104
        %v702 = vpop.permute.xlu0 %701
        %703 = vrot.lane.b32.xlu0 %v684, 104
        %v704 = vpop.permute.xlu0 %703
        %707 = vrot.lane.b32.xlu0 %v681, 96
        %v708 = vpop.permute.xlu0 %707
        %709 = vrot.lane.b32.xlu0 %v684, 96
        %v710 = vpop.permute.xlu0 %709
        %713 = vrot.lane.b32.xlu0 %v681, 88
        %v714 = vpop.permute.xlu0 %713
        %715 = vrot.lane.b32.xlu0 %v684, 88
        %v716 = vpop.permute.xlu0 %715
        %719 = vrot.lane.b32.xlu0 %v681, 80
        %v720 = vpop.permute.xlu0 %719
        %721 = vrot.lane.b32.xlu0 %v684, 80
        %v722 = vpop.permute.xlu0 %721
        %725 = vrot.lane.b32.xlu0 %v681, 72
        %v726 = vpop.permute.xlu0 %725
        %727 = vrot.lane.b32.xlu0 %v684, 72
        %v728 = vpop.permute.xlu0 %727
        %v731 = vpack.c.bf16 %v684, %v681
        %v732 = vpack.c.bf16 %v692, %v690
        %v733 = vpack.c.bf16 %v698, %v696
        %v734 = vpack.c.bf16 %v704, %v702
        %v735 = vpack.c.bf16 %v710, %v708
        %v736 = vpack.c.bf16 %v716, %v714
        %v737 = vpack.c.bf16 %v722, %v720
        %v738 = vpack.c.bf16 %v728, %v726
        %v747 = vunpack.c.l.b16 %v731
        %v748 = vunpack.c.h.b16 %v731
        %v749 = vunpack.c.l.b16 %v732
        %v750 = vunpack.c.h.b16 %v732
        %v751 = vunpack.c.l.b16 %v733
        %v752 = vunpack.c.h.b16 %v733
        %v753 = vunpack.c.l.b16 %v734
        %v754 = vunpack.c.h.b16 %v734
        %v755 = vunpack.c.l.b16 %v735
        %v756 = vunpack.c.h.b16 %v735
        %v757 = vunpack.c.l.b16 %v736
        %v758 = vunpack.c.h.b16 %v736
        %v759 = vunpack.c.l.b16 %v737
        %v760 = vunpack.c.h.b16 %v737
        %v761 = vunpack.c.l.b16 %v738
        %v762 = vunpack.c.h.b16 %v738
        %v763 = vpack.c.b16 %v747, %v747
        %v764 = vpack.c.b16 %v748, %v748
        %v765 = vpack.c.b16 %v749, %v749
        %v766 = vpack.c.b16 %v750, %v750
        %v767 = vpack.c.b16 %v751, %v751
        %v768 = vpack.c.b16 %v752, %v752
        %v769 = vpack.c.b16 %v753, %v753
        %v770 = vpack.c.b16 %v754, %v754
        %v771 = vpack.c.b16 %v755, %v755
        %v772 = vpack.c.b16 %v756, %v756
        %v773 = vpack.c.b16 %v757, %v757
        %v774 = vpack.c.b16 %v758, %v758
        %v775 = vpack.c.b16 %v759, %v759
        %v776 = vpack.c.b16 %v760, %v760
        %v777 = vpack.c.b16 %v761, %v761
        %v778 = vpack.c.b16 %v762, %v762
        %795 = vst.msk [vmem:[%s477] sm:$0xf] %vm608, %v763
        %796 = vst.msk [vmem:[%s477 + $0x4] sm:$0xf] %vm608, %v764
        %797 = vst.msk [vmem:[%s477 + $0x8] sm:$0xf] %vm608, %v765
        %798 = vst.msk [vmem:[%s477 + $0xc] sm:$0xf] %vm608, %v766
        %799 = vst.msk [vmem:[%s477 + $0x10] sm:$0xf] %vm608, %v767
        %800 = vst.msk [vmem:[%s477 + $0x14] sm:$0xf] %vm608, %v768
        %801 = vst.msk [vmem:[%s477 + $0x18] sm:$0xf] %vm608, %v769
        %802 = vst.msk [vmem:[%s477 + $0x1c] sm:$0xf] %vm608, %v770
        %803 = vst.msk [vmem:[%s477 + $0x20] sm:$0xf] %vm608, %v771
        %804 = vst.msk [vmem:[%s477 + $0x24] sm:$0xf] %vm608, %v772
        %805 = vst.msk [vmem:[%s477 + $0x28] sm:$0xf] %vm608, %v773
        %806 = vst.msk [vmem:[%s477 + $0x2c] sm:$0xf] %vm608, %v774
        %807 = vst.msk [vmem:[%s477 + $0x30] sm:$0xf] %vm608, %v775
        %808 = vst.msk [vmem:[%s477 + $0x34] sm:$0xf] %vm608, %v776
        %809 = vst.msk [vmem:[%s477 + $0x38] sm:$0xf] %vm608, %v777
        %810 = vst.msk [vmem:[%s477 + $0x3c] sm:$0xf] %vm608, %v778
        %s811 = sand.u32 %s222, 1
        %s812 = scalar_lea.sflag [#allocation4], %s811
        %s813 = sand.u32 %s222, 1
        %s814 = smul.addr %s813, 32
        %s815 = scalar_lea.vmem [#allocation16], %s814
        %s816 = sand.u32 %s248, 1
        %s817 = scalar_lea.sflag [#allocation18], %s816
        %s818 = sand.u32 %s248, 1
        %s819 = smul.addr %s818, 64
        %s820 = scalar_lea.vmem [#allocation17], %s819
        // Predicated region
        $region85: #{tpu_custom_call.1} parent=51 // pred_check
          %p821 = pneg %p232
        $region86: #{tpu_custom_call.1} parent=51 // pred_check_branch
          %823 = sbr.rel (%p821) target = $region88
        $region87: #{tpu_custom_call.1} parent=51 // pred_region
          %s825 = ssub.s32 512, 512
          %826 = vsyncadd %s812, %s825
          %s827 = smul.addr %s36, 8
          %s828 = smul.addr %s827, 64
          %s829 = scalar_lea.hbm %s8, %s828
          %s830 = sshll.u32 %s815, 4
          %s831 = int_to_ptr.vmem [resolvable:$true] %s830
          %836 = dma.vmem_to_hbm [thread:$0]  %s831, 512, %s829, %s812, 64, 64, 4
        $region88: #{tpu_custom_call.1} parent=51 // pred_fallthru
          _
        // Predicated region
        $region89: #{tpu_custom_call.1} parent=51 // pred_check
          %p837 = pneg %p258
        $region90: #{tpu_custom_call.1} parent=51 // pred_check_branch
          %839 = sbr.rel (%p837) target = $region92
        $region91: #{tpu_custom_call.1} parent=51 // pred_region
          %s841 = ssub.s32 1024, 1024
          %842 = vsyncadd %s817, %s841
          %s843 = smul.addr %s36, 16
          %s844 = smul.addr %s843, 64
          %s845 = scalar_lea.hbm %s9, %s844
          %s846 = sshll.u32 %s820, 4
          %s847 = int_to_ptr.vmem [resolvable:$true] %s846
          %852 = dma.vmem_to_hbm [thread:$0]  %s847, 1024, %s845, %s817, 64, 64, 4
        $region92: #{tpu_custom_call.1} parent=51 // pred_fallthru
          _
      $region52: #{tpu_custom_call.1} parent=5 // pred_fallthru
        _
      %p853 = scmp.le.s32.totalorder 2, %s31
      // Predicated region
      $region93: #{tpu_custom_call.1} parent=5 // pred_check
        %p854 = pneg %p853
      $region94: #{tpu_custom_call.1} parent=5 // pred_check_branch
        %856 = sbr.rel (%p854) target = $region96
      $region95: #{tpu_custom_call.1} parent=5 // pred_region
        %s857 = ssub.s32 %s31, 2
        // Predicated region
        $region97: #{tpu_custom_call.1} parent=95 // pred_check
          %p858 = pneg %p238
        $region98: #{tpu_custom_call.1} parent=95 // pred_check_branch
          %860 = sbr.rel (%p858) target = $region100
        $region99: #{tpu_custom_call.1} parent=95 // pred_region
          %s861 = sand.u32 %s223, 1
          %s862 = scalar_lea.sflag [#allocation4], %s861
          %s863 = sand.u32 %s223, 1
          %s864 = smul.addr %s863, 32
          %s865 = scalar_lea.vmem [#allocation16], %s864
          %866 = dma.done %s862, 512
        $region100: #{tpu_custom_call.1} parent=95 // pred_fallthru
          _
        // Predicated region
        $region101: #{tpu_custom_call.1} parent=95 // pred_check
          %p867 = pneg %p264
        $region102: #{tpu_custom_call.1} parent=95 // pred_check_branch
          %869 = sbr.rel (%p867) target = $region104
        $region103: #{tpu_custom_call.1} parent=95 // pred_region
          %s870 = sand.u32 %s249, 1
          %s871 = scalar_lea.sflag [#allocation18], %s870
          %s872 = sand.u32 %s249, 1
          %s873 = smul.addr %s872, 64
          %s874 = scalar_lea.vmem [#allocation17], %s873
          %875 = dma.done %s871, 1024
        $region104: #{tpu_custom_call.1} parent=95 // pred_fallthru
          _
      $region96: #{tpu_custom_call.1} parent=5 // pred_fallthru
        _
    $region6: #{tpu_custom_call.1} parent=1 // loop_footer
      %s35 = sadd.s32 1, %s31
    $region7: #{tpu_custom_call.1} parent=1 // loop_footer_branch
      %30 = sbr.rel target = $region3
    $region8: #{tpu_custom_call.1} parent=1 // loop_exit
      _
    %876 = vsyncpa [#allocation3], 1
    %s877 = scalar_lea.sflag [#allocation3], 1
    %878 = vsyncpa %s877, 1
    %879 = vsyncpa [#allocation6], 1
    %s880 = scalar_lea.sflag [#allocation6], 1
    %881 = vsyncpa %s880, 1
    %882 = vsyncpa [#allocation9], 1
    %883 = vsyncpa [#allocation12], 1
    %884 = vsyncpa [#allocation15], 1
    %885 = vsyncpa [#allocation4], 1
    %s886 = scalar_lea.sflag [#allocation4], 1
    %887 = vsyncpa %s886, 1
    %888 = vsyncpa [#allocation18], 1
    %s889 = scalar_lea.sflag [#allocation18], 1
    %890 = vsyncpa %s889, 1

</llo_original>
